<compile_context>
chip_gen: v5e
topology: v5e:2x2
jax: 0.10.0
libtpu: 0.0.40
codegen_flags: <defaults>
</compile_context>

<pallas_src>
import jax
import jax.numpy as jnp
from jax.experimental import pallas as pl
from jax.experimental.pallas import tpu as pltpu

BN_EPS = 1e-5


def make_kernel(BS: int, M: int):
    inv_n = 1.0 / float(BS * M)

    def kernel(x_ref, wlin_ref, blin_ref, wc3_ref, colsum_ref, bc_ref, w2_ref,
               b2_ref, o_ref):
        x = x_ref[...]                                     # (BS, M)

        # layers[0..2]: ABS -> Sigmoid -> Linear(M, M)
        # TODO(synk): ABS() is not defined in the provided source; assumed |x|.
        t = jax.nn.sigmoid(jnp.abs(x))
        y = (jnp.dot(t, wlin_ref[...], preferred_element_type=jnp.float32)
             + blin_ref[...])                              # (BS, M)

        # Even powers p_j = y^(2j) = (y*y)^j via a squaring tree (log-depth).
        y2 = y * y
        pows = {1: y2}

        def even_pow(e):
            r = pows.get(e)
            if r is None:
                h = e // 2
                r = even_pow(h) * even_pow(e - h)
                pows[e] = r
            return r

        # layers[3]: conv_matrix_layer with BatchNorm folded into the 1x1 conv:
        #   conv_out = sum_j inv_std_j * (p_j @ Wc_j)
        #              - sum_j inv_std_j * mean_j * colsum(Wc_j) + bc
        # j = 0 skipped: p_0 == 1, so its (train-mode, gamma=1/beta=0) BN
        # output is identically zero.
        conv_acc = jnp.zeros((BS, M), jnp.float32)         # (BS, M)
        corr = jnp.zeros((1, M), jnp.float32)              # (1, M)
        for j in range(1, M):
            p = even_pow(j)                                # (BS, M) = y^(2j)
            mean = jnp.sum(p) * inv_n                      # scalar
            msq = jnp.sum(p * p) * inv_n                   # scalar, indep. of mean
            var = msq - mean * mean                        # biased var (PyTorch BN)
            s = jax.lax.rsqrt(var + BN_EPS)                # inv_std
            conv_acc = conv_acc + jnp.dot(
                p * s, wc3_ref[j], preferred_element_type=jnp.float32)
            corr = corr + (s * mean) * colsum_ref[pl.ds(j, 1), :]
        conv_out = conv_acc + (bc_ref[...] - corr)         # (BS, M)

        # layers[4..6]: X*c, X + X*c, Conv2d(M, 1, 1)  ->  one fused dot.
        res = x * (1.0 + conv_out)                         # (BS, M)
        o_ref[...] = (jnp.dot(res, w2_ref[...], preferred_element_type=jnp.float32)
                      + b2_ref[0, 0])                      # (BS, 1), b2 from SMEM

    return kernel


@jax.jit
def model1_forward(x, wlin, blin, wc, bc, w2, b2):
    """x: (BS, M) -- PyTorch X of shape (BS, M, 1) with the trailing dim squeezed.

    Weights in native PyTorch layouts:
      wlin (M, M), blin (M,), wc (M, M*M), bc (M,), w2 (M,), b2 (1,).
    """
    BS, M = x.shape
    wlin_t = wlin.T                                        # (M, M)   W_lin^T
    wc3 = wc.T.reshape(M, M, M)                            # [j, i, o]
    colsum = jnp.sum(wc3, axis=1)                          # (M, M): sum_i Wc_j[i, o]
    out = pl.pallas_call(
        make_kernel(BS, M),
        out_shape=jax.ShapeDtypeStruct((BS, 1), jnp.float32),
        in_specs=[
            pl.BlockSpec(memory_space=pltpu.MemorySpace.VMEM),   # x
            pl.BlockSpec(memory_space=pltpu.MemorySpace.VMEM),   # wlin^T
            pl.BlockSpec(memory_space=pltpu.MemorySpace.VMEM),   # blin (1, M)
            pl.BlockSpec(memory_space=pltpu.MemorySpace.VMEM),   # wc3 (M, M, M)
            pl.BlockSpec(memory_space=pltpu.MemorySpace.VMEM),   # colsum (M, M)
            pl.BlockSpec(memory_space=pltpu.MemorySpace.VMEM),   # bc (1, M)
            pl.BlockSpec(memory_space=pltpu.MemorySpace.VMEM),   # w2 (M, 1)
            pl.BlockSpec(memory_space=pltpu.MemorySpace.SMEM),   # b2 scalar (1, 1)
        ],
        out_specs=pl.BlockSpec(memory_space=pltpu.MemorySpace.VMEM),
    )(x, wlin_t, blin.reshape(1, M), wc3, colsum, bc.reshape(1, M),
      w2.reshape(M, 1), b2.reshape(1, 1))
    return out.reshape(BS, 1, 1, 1)


def reference(x, wlin, blin, wc, bc, w2, b2):
    """Pure-JAX reference mirroring the PyTorch forward (for verification)."""
    BS, M = x.shape
    t = jax.nn.sigmoid(jnp.abs(x))
    y = t @ wlin.T + blin                                  # (BS, M)
    j = jnp.arange(M, dtype=jnp.float32)[None, :, None]    # (1, M, 1)
    U = jnp.power(y[:, None, :] ** 2, j)                   # U[b, j, i] = y[b,i]^(2j)
    mean = U.mean(axis=(0, 2), keepdims=True)
    var = ((U - mean) ** 2).mean(axis=(0, 2), keepdims=True)
    U_bn = (U - mean) / jnp.sqrt(var + BN_EPS)
    conv_out = U_bn.reshape(BS, M * M) @ wc.T + bc         # (BS, M)
    res = x + x * conv_out
    out = res @ w2.reshape(M, 1) + b2.reshape(1, 1)
    return out.reshape(BS, 1, 1, 1)


if __name__ == "__main__":
    M, BS = 8, 4                                           # input_size=8, batch_size=4
    key = jax.random.PRNGKey(0)
    ks = jax.random.split(key, 7)

    # X corresponds to PyTorch shape (BS, M, 1); kernel uses the squeezed (BS, M).
    x = jax.random.normal(ks[0], (BS, M), jnp.float32)

    lim_lin = 1.0 / (M ** 0.5)
    wlin = jax.random.uniform(ks[1], (M, M), jnp.float32, -lim_lin, lim_lin)
    blin = jax.random.uniform(ks[2], (M,), jnp.float32, -lim_lin, lim_lin)
    lim_c = 1.0 / float(M)                                 # fan_in = M*M for 1x1 conv
    wc = jax.random.uniform(ks[3], (M, M * M), jnp.float32, -lim_c, lim_c)
    bc = jax.random.uniform(ks[4], (M,), jnp.float32, -lim_c, lim_c)
    lim2 = 1.0 / (M ** 0.5)
    w2 = jax.random.uniform(ks[5], (M,), jnp.float32, -lim2, lim2)
    b2 = jax.random.uniform(ks[6], (1,), jnp.float32, -lim2, lim2)

    out = model1_forward(x, wlin, blin, wc, bc, w2, b2)
    out = jax.block_until_ready(out)
    assert out.shape == (BS, 1, 1, 1)

    ref = reference(x, wlin, blin, wc, bc, w2, b2)
    assert jnp.allclose(out, ref, atol=1e-4, rtol=1e-3), (out, ref)

    print("KERNEL_OK")
</pallas_src>

<mosaic_0001>
module attributes {stable_mosaic.version = 11 : i64} {
  func.func @kernel(%arg0: memref<4x8xf32, #tpu.memory_space<vmem>>, %arg1: memref<8x8xf32, #tpu.memory_space<vmem>>, %arg2: memref<1x8xf32, #tpu.memory_space<vmem>>, %arg3: memref<8x8x8xf32, #tpu.memory_space<vmem>>, %arg4: memref<8x8xf32, #tpu.memory_space<vmem>>, %arg5: memref<1x8xf32, #tpu.memory_space<vmem>>, %arg6: memref<8x1xf32, #tpu.memory_space<vmem>>, %arg7: memref<1x1xf32, #tpu.memory_space<smem>>, %arg8: memref<4x1xf32, #tpu.memory_space<vmem>>) attributes {dimension_semantics = [], scalar_prefetch = 0 : i64, scratch_operands = 0 : i64, tpu.core_type = #tpu.core_type<tc>} {
    %c0 = arith.constant 0 : index
    %c0_0 = arith.constant 0 : index
    %0 = vector.load %arg0[%c0, %c0_0] : memref<4x8xf32, #tpu.memory_space<vmem>>, vector<4x8xf32>
    %1 = math.absf %0 : vector<4x8xf32>
    %2 = arith.negf %1 : vector<4x8xf32>
    %3 = math.exp %2 : vector<4x8xf32>
    %cst = arith.constant 1.000000e+00 : f32
    %4 = vector.broadcast %cst : f32 to vector<4x8xf32>
    %5 = arith.addf %4, %3 : vector<4x8xf32>
    %6 = arith.divf %4, %5 : vector<4x8xf32>
    %c0_1 = arith.constant 0 : index
    %c0_2 = arith.constant 0 : index
    %7 = vector.load %arg1[%c0_1, %c0_2] : memref<8x8xf32, #tpu.memory_space<vmem>>, vector<8x8xf32>
    %cst_3 = arith.constant dense<0.000000e+00> : vector<4x8xf32>
    %8 = tpu.matmul %6, %7, %cst_3 {dimension_numbers = #tpu.dot_dimension_numbers<[1], [0], [0], [1], [0, 0, 1, 1], [], []>} : vector<4x8xf32>, vector<8x8xf32>, vector<4x8xf32> -> vector<4x8xf32>
    %c0_4 = arith.constant 0 : index
    %c0_5 = arith.constant 0 : index
    %9 = vector.load %arg2[%c0_4, %c0_5] : memref<1x8xf32, #tpu.memory_space<vmem>>, vector<1x8xf32>
    %10 = vector.broadcast %9 : vector<1x8xf32> to vector<4x8xf32>
    %11 = arith.addf %8, %10 : vector<4x8xf32>
    %12 = arith.mulf %11, %11 : vector<4x8xf32>
    %cst_6 = arith.constant 0.000000e+00 : f32
    %13 = vector.broadcast %cst_6 : f32 to vector<4x8xf32>
    %cst_7 = arith.constant 0.000000e+00 : f32
    %14 = vector.broadcast %cst_7 : f32 to vector<1x8xf32>
    %15 = vector.shape_cast %12 : vector<4x8xf32> to vector<1x4x8xf32>
    %cst_8 = arith.constant dense<0.000000e+00> : vector<1xf32>
    %16 = vector.multi_reduction <add>, %15, %cst_8 [1, 2] : vector<1x4x8xf32> to vector<1xf32>
    %17 = vector.shape_cast %16 : vector<1xf32> to vector<1x1x1xf32>
    %18 = vector.extract %17[0, 0, 0] : f32 from vector<1x1x1xf32>
    %cst_9 = arith.constant 3.125000e-02 : f32
    %19 = arith.mulf %18, %cst_9 : f32
    %20 = arith.mulf %12, %12 : vector<4x8xf32>
    %21 = vector.shape_cast %20 : vector<4x8xf32> to vector<1x4x8xf32>
    %cst_10 = arith.constant dense<0.000000e+00> : vector<1xf32>
    %22 = vector.multi_reduction <add>, %21, %cst_10 [1, 2] : vector<1x4x8xf32> to vector<1xf32>
    %23 = vector.shape_cast %22 : vector<1xf32> to vector<1x1x1xf32>
    %24 = vector.extract %23[0, 0, 0] : f32 from vector<1x1x1xf32>
    %cst_11 = arith.constant 3.125000e-02 : f32
    %25 = arith.mulf %24, %cst_11 : f32
    %26 = arith.mulf %19, %19 : f32
    %27 = arith.subf %25, %26 : f32
    %cst_12 = arith.constant 9.99999974E-6 : f32
    %28 = arith.addf %27, %cst_12 : f32
    %29 = math.rsqrt %28 : f32
    %30 = vector.broadcast %29 : f32 to vector<4x8xf32>
    %31 = arith.mulf %12, %30 : vector<4x8xf32>
    %c1 = arith.constant 1 : index
    %c0_13 = arith.constant 0 : index
    %c0_14 = arith.constant 0 : index
    %32 = vector.load %arg3[%c1, %c0_13, %c0_14] : memref<8x8x8xf32, #tpu.memory_space<vmem>>, vector<1x8x8xf32>
    %33 = vector.shape_cast %32 : vector<1x8x8xf32> to vector<8x8xf32>
    %cst_15 = arith.constant dense<0.000000e+00> : vector<4x8xf32>
    %34 = tpu.matmul %31, %33, %cst_15 {dimension_numbers = #tpu.dot_dimension_numbers<[1], [0], [0], [1], [0, 0, 1, 1], [], []>} : vector<4x8xf32>, vector<8x8xf32>, vector<4x8xf32> -> vector<4x8xf32>
    %35 = arith.addf %13, %34 : vector<4x8xf32>
    %36 = arith.mulf %29, %19 : f32
    %c1_16 = arith.constant 1 : index
    %c0_17 = arith.constant 0 : index
    %37 = vector.load %arg4[%c1_16, %c0_17] : memref<8x8xf32, #tpu.memory_space<vmem>>, vector<1x8xf32>
    %38 = vector.broadcast %36 : f32 to vector<1x8xf32>
    %39 = arith.mulf %38, %37 : vector<1x8xf32>
    %40 = arith.addf %14, %39 : vector<1x8xf32>
    %41 = arith.mulf %12, %12 : vector<4x8xf32>
    %42 = vector.shape_cast %41 : vector<4x8xf32> to vector<1x4x8xf32>
    %cst_18 = arith.constant dense<0.000000e+00> : vector<1xf32>
    %43 = vector.multi_reduction <add>, %42, %cst_18 [1, 2] : vector<1x4x8xf32> to vector<1xf32>
    %44 = vector.shape_cast %43 : vector<1xf32> to vector<1x1x1xf32>
    %45 = vector.extract %44[0, 0, 0] : f32 from vector<1x1x1xf32>
    %cst_19 = arith.constant 3.125000e-02 : f32
    %46 = arith.mulf %45, %cst_19 : f32
    %47 = arith.mulf %41, %41 : vector<4x8xf32>
    %48 = vector.shape_cast %47 : vector<4x8xf32> to vector<1x4x8xf32>
    %cst_20 = arith.constant dense<0.000000e+00> : vector<1xf32>
    %49 = vector.multi_reduction <add>, %48, %cst_20 [1, 2] : vector<1x4x8xf32> to vector<1xf32>
    %50 = vector.shape_cast %49 : vector<1xf32> to vector<1x1x1xf32>
    %51 = vector.extract %50[0, 0, 0] : f32 from vector<1x1x1xf32>
    %cst_21 = arith.constant 3.125000e-02 : f32
    %52 = arith.mulf %51, %cst_21 : f32
    %53 = arith.mulf %46, %46 : f32
    %54 = arith.subf %52, %53 : f32
    %cst_22 = arith.constant 9.99999974E-6 : f32
    %55 = arith.addf %54, %cst_22 : f32
    %56 = math.rsqrt %55 : f32
    %57 = vector.broadcast %56 : f32 to vector<4x8xf32>
    %58 = arith.mulf %41, %57 : vector<4x8xf32>
    %c2 = arith.constant 2 : index
    %c0_23 = arith.constant 0 : index
    %c0_24 = arith.constant 0 : index
    %59 = vector.load %arg3[%c2, %c0_23, %c0_24] : memref<8x8x8xf32, #tpu.memory_space<vmem>>, vector<1x8x8xf32>
    %60 = vector.shape_cast %59 : vector<1x8x8xf32> to vector<8x8xf32>
    %cst_25 = arith.constant dense<0.000000e+00> : vector<4x8xf32>
    %61 = tpu.matmul %58, %60, %cst_25 {dimension_numbers = #tpu.dot_dimension_numbers<[1], [0], [0], [1], [0, 0, 1, 1], [], []>} : vector<4x8xf32>, vector<8x8xf32>, vector<4x8xf32> -> vector<4x8xf32>
    %62 = arith.addf %35, %61 : vector<4x8xf32>
    %63 = arith.mulf %56, %46 : f32
    %c2_26 = arith.constant 2 : index
    %c0_27 = arith.constant 0 : index
    %64 = vector.load %arg4[%c2_26, %c0_27] : memref<8x8xf32, #tpu.memory_space<vmem>>, vector<1x8xf32>
    %65 = vector.broadcast %63 : f32 to vector<1x8xf32>
    %66 = arith.mulf %65, %64 : vector<1x8xf32>
    %67 = arith.addf %40, %66 : vector<1x8xf32>
    %68 = arith.mulf %12, %41 : vector<4x8xf32>
    %69 = vector.shape_cast %68 : vector<4x8xf32> to vector<1x4x8xf32>
    %cst_28 = arith.constant dense<0.000000e+00> : vector<1xf32>
    %70 = vector.multi_reduction <add>, %69, %cst_28 [1, 2] : vector<1x4x8xf32> to vector<1xf32>
    %71 = vector.shape_cast %70 : vector<1xf32> to vector<1x1x1xf32>
    %72 = vector.extract %71[0, 0, 0] : f32 from vector<1x1x1xf32>
    %cst_29 = arith.constant 3.125000e-02 : f32
    %73 = arith.mulf %72, %cst_29 : f32
    %74 = arith.mulf %68, %68 : vector<4x8xf32>
    %75 = vector.shape_cast %74 : vector<4x8xf32> to vector<1x4x8xf32>
    %cst_30 = arith.constant dense<0.000000e+00> : vector<1xf32>
    %76 = vector.multi_reduction <add>, %75, %cst_30 [1, 2] : vector<1x4x8xf32> to vector<1xf32>
    %77 = vector.shape_cast %76 : vector<1xf32> to vector<1x1x1xf32>
    %78 = vector.extract %77[0, 0, 0] : f32 from vector<1x1x1xf32>
    %cst_31 = arith.constant 3.125000e-02 : f32
    %79 = arith.mulf %78, %cst_31 : f32
    %80 = arith.mulf %73, %73 : f32
    %81 = arith.subf %79, %80 : f32
    %cst_32 = arith.constant 9.99999974E-6 : f32
    %82 = arith.addf %81, %cst_32 : f32
    %83 = math.rsqrt %82 : f32
    %84 = vector.broadcast %83 : f32 to vector<4x8xf32>
    %85 = arith.mulf %68, %84 : vector<4x8xf32>
    %c3 = arith.constant 3 : index
    %c0_33 = arith.constant 0 : index
    %c0_34 = arith.constant 0 : index
    %86 = vector.load %arg3[%c3, %c0_33, %c0_34] : memref<8x8x8xf32, #tpu.memory_space<vmem>>, vector<1x8x8xf32>
    %87 = vector.shape_cast %86 : vector<1x8x8xf32> to vector<8x8xf32>
    %cst_35 = arith.constant dense<0.000000e+00> : vector<4x8xf32>
    %88 = tpu.matmul %85, %87, %cst_35 {dimension_numbers = #tpu.dot_dimension_numbers<[1], [0], [0], [1], [0, 0, 1, 1], [], []>} : vector<4x8xf32>, vector<8x8xf32>, vector<4x8xf32> -> vector<4x8xf32>
    %89 = arith.addf %62, %88 : vector<4x8xf32>
    %90 = arith.mulf %83, %73 : f32
    %c3_36 = arith.constant 3 : index
    %c0_37 = arith.constant 0 : index
    %91 = vector.load %arg4[%c3_36, %c0_37] : memref<8x8xf32, #tpu.memory_space<vmem>>, vector<1x8xf32>
    %92 = vector.broadcast %90 : f32 to vector<1x8xf32>
    %93 = arith.mulf %92, %91 : vector<1x8xf32>
    %94 = arith.addf %67, %93 : vector<1x8xf32>
    %95 = arith.mulf %41, %41 : vector<4x8xf32>
    %96 = vector.shape_cast %95 : vector<4x8xf32> to vector<1x4x8xf32>
    %cst_38 = arith.constant dense<0.000000e+00> : vector<1xf32>
    %97 = vector.multi_reduction <add>, %96, %cst_38 [1, 2] : vector<1x4x8xf32> to vector<1xf32>
    %98 = vector.shape_cast %97 : vector<1xf32> to vector<1x1x1xf32>
    %99 = vector.extract %98[0, 0, 0] : f32 from vector<1x1x1xf32>
    %cst_39 = arith.constant 3.125000e-02 : f32
    %100 = arith.mulf %99, %cst_39 : f32
    %101 = arith.mulf %95, %95 : vector<4x8xf32>
    %102 = vector.shape_cast %101 : vector<4x8xf32> to vector<1x4x8xf32>
    %cst_40 = arith.constant dense<0.000000e+00> : vector<1xf32>
    %103 = vector.multi_reduction <add>, %102, %cst_40 [1, 2] : vector<1x4x8xf32> to vector<1xf32>
    %104 = vector.shape_cast %103 : vector<1xf32> to vector<1x1x1xf32>
    %105 = vector.extract %104[0, 0, 0] : f32 from vector<1x1x1xf32>
    %cst_41 = arith.constant 3.125000e-02 : f32
    %106 = arith.mulf %105, %cst_41 : f32
    %107 = arith.mulf %100, %100 : f32
    %108 = arith.subf %106, %107 : f32
    %cst_42 = arith.constant 9.99999974E-6 : f32
    %109 = arith.addf %108, %cst_42 : f32
    %110 = math.rsqrt %109 : f32
    %111 = vector.broadcast %110 : f32 to vector<4x8xf32>
    %112 = arith.mulf %95, %111 : vector<4x8xf32>
    %c4 = arith.constant 4 : index
    %c0_43 = arith.constant 0 : index
    %c0_44 = arith.constant 0 : index
    %113 = vector.load %arg3[%c4, %c0_43, %c0_44] : memref<8x8x8xf32, #tpu.memory_space<vmem>>, vector<1x8x8xf32>
    %114 = vector.shape_cast %113 : vector<1x8x8xf32> to vector<8x8xf32>
    %cst_45 = arith.constant dense<0.000000e+00> : vector<4x8xf32>
    %115 = tpu.matmul %112, %114, %cst_45 {dimension_numbers = #tpu.dot_dimension_numbers<[1], [0], [0], [1], [0, 0, 1, 1], [], []>} : vector<4x8xf32>, vector<8x8xf32>, vector<4x8xf32> -> vector<4x8xf32>
    %116 = arith.addf %89, %115 : vector<4x8xf32>
    %117 = arith.mulf %110, %100 : f32
    %c4_46 = arith.constant 4 : index
    %c0_47 = arith.constant 0 : index
    %118 = vector.load %arg4[%c4_46, %c0_47] : memref<8x8xf32, #tpu.memory_space<vmem>>, vector<1x8xf32>
    %119 = vector.broadcast %117 : f32 to vector<1x8xf32>
    %120 = arith.mulf %119, %118 : vector<1x8xf32>
    %121 = arith.addf %94, %120 : vector<1x8xf32>
    %122 = arith.mulf %41, %68 : vector<4x8xf32>
    %123 = vector.shape_cast %122 : vector<4x8xf32> to vector<1x4x8xf32>
    %cst_48 = arith.constant dense<0.000000e+00> : vector<1xf32>
    %124 = vector.multi_reduction <add>, %123, %cst_48 [1, 2] : vector<1x4x8xf32> to vector<1xf32>
    %125 = vector.shape_cast %124 : vector<1xf32> to vector<1x1x1xf32>
    %126 = vector.extract %125[0, 0, 0] : f32 from vector<1x1x1xf32>
    %cst_49 = arith.constant 3.125000e-02 : f32
    %127 = arith.mulf %126, %cst_49 : f32
    %128 = arith.mulf %122, %122 : vector<4x8xf32>
    %129 = vector.shape_cast %128 : vector<4x8xf32> to vector<1x4x8xf32>
    %cst_50 = arith.constant dense<0.000000e+00> : vector<1xf32>
    %130 = vector.multi_reduction <add>, %129, %cst_50 [1, 2] : vector<1x4x8xf32> to vector<1xf32>
    %131 = vector.shape_cast %130 : vector<1xf32> to vector<1x1x1xf32>
    %132 = vector.extract %131[0, 0, 0] : f32 from vector<1x1x1xf32>
    %cst_51 = arith.constant 3.125000e-02 : f32
    %133 = arith.mulf %132, %cst_51 : f32
    %134 = arith.mulf %127, %127 : f32
    %135 = arith.subf %133, %134 : f32
    %cst_52 = arith.constant 9.99999974E-6 : f32
    %136 = arith.addf %135, %cst_52 : f32
    %137 = math.rsqrt %136 : f32
    %138 = vector.broadcast %137 : f32 to vector<4x8xf32>
    %139 = arith.mulf %122, %138 : vector<4x8xf32>
    %c5 = arith.constant 5 : index
    %c0_53 = arith.constant 0 : index
    %c0_54 = arith.constant 0 : index
    %140 = vector.load %arg3[%c5, %c0_53, %c0_54] : memref<8x8x8xf32, #tpu.memory_space<vmem>>, vector<1x8x8xf32>
    %141 = vector.shape_cast %140 : vector<1x8x8xf32> to vector<8x8xf32>
    %cst_55 = arith.constant dense<0.000000e+00> : vector<4x8xf32>
    %142 = tpu.matmul %139, %141, %cst_55 {dimension_numbers = #tpu.dot_dimension_numbers<[1], [0], [0], [1], [0, 0, 1, 1], [], []>} : vector<4x8xf32>, vector<8x8xf32>, vector<4x8xf32> -> vector<4x8xf32>
    %143 = arith.addf %116, %142 : vector<4x8xf32>
    %144 = arith.mulf %137, %127 : f32
    %c5_56 = arith.constant 5 : index
    %c0_57 = arith.constant 0 : index
    %145 = vector.load %arg4[%c5_56, %c0_57] : memref<8x8xf32, #tpu.memory_space<vmem>>, vector<1x8xf32>
    %146 = vector.broadcast %144 : f32 to vector<1x8xf32>
    %147 = arith.mulf %146, %145 : vector<1x8xf32>
    %148 = arith.addf %121, %147 : vector<1x8xf32>
    %149 = arith.mulf %68, %68 : vector<4x8xf32>
    %150 = vector.shape_cast %149 : vector<4x8xf32> to vector<1x4x8xf32>
    %cst_58 = arith.constant dense<0.000000e+00> : vector<1xf32>
    %151 = vector.multi_reduction <add>, %150, %cst_58 [1, 2] : vector<1x4x8xf32> to vector<1xf32>
    %152 = vector.shape_cast %151 : vector<1xf32> to vector<1x1x1xf32>
    %153 = vector.extract %152[0, 0, 0] : f32 from vector<1x1x1xf32>
    %cst_59 = arith.constant 3.125000e-02 : f32
    %154 = arith.mulf %153, %cst_59 : f32
    %155 = arith.mulf %149, %149 : vector<4x8xf32>
    %156 = vector.shape_cast %155 : vector<4x8xf32> to vector<1x4x8xf32>
    %cst_60 = arith.constant dense<0.000000e+00> : vector<1xf32>
    %157 = vector.multi_reduction <add>, %156, %cst_60 [1, 2] : vector<1x4x8xf32> to vector<1xf32>
    %158 = vector.shape_cast %157 : vector<1xf32> to vector<1x1x1xf32>
    %159 = vector.extract %158[0, 0, 0] : f32 from vector<1x1x1xf32>
    %cst_61 = arith.constant 3.125000e-02 : f32
    %160 = arith.mulf %159, %cst_61 : f32
    %161 = arith.mulf %154, %154 : f32
    %162 = arith.subf %160, %161 : f32
    %cst_62 = arith.constant 9.99999974E-6 : f32
    %163 = arith.addf %162, %cst_62 : f32
    %164 = math.rsqrt %163 : f32
    %165 = vector.broadcast %164 : f32 to vector<4x8xf32>
    %166 = arith.mulf %149, %165 : vector<4x8xf32>
    %c6 = arith.constant 6 : index
    %c0_63 = arith.constant 0 : index
    %c0_64 = arith.constant 0 : index
    %167 = vector.load %arg3[%c6, %c0_63, %c0_64] : memref<8x8x8xf32, #tpu.memory_space<vmem>>, vector<1x8x8xf32>
    %168 = vector.shape_cast %167 : vector<1x8x8xf32> to vector<8x8xf32>
    %cst_65 = arith.constant dense<0.000000e+00> : vector<4x8xf32>
    %169 = tpu.matmul %166, %168, %cst_65 {dimension_numbers = #tpu.dot_dimension_numbers<[1], [0], [0], [1], [0, 0, 1, 1], [], []>} : vector<4x8xf32>, vector<8x8xf32>, vector<4x8xf32> -> vector<4x8xf32>
    %170 = arith.addf %143, %169 : vector<4x8xf32>
    %171 = arith.mulf %164, %154 : f32
    %c6_66 = arith.constant 6 : index
    %c0_67 = arith.constant 0 : index
    %172 = vector.load %arg4[%c6_66, %c0_67] : memref<8x8xf32, #tpu.memory_space<vmem>>, vector<1x8xf32>
    %173 = vector.broadcast %171 : f32 to vector<1x8xf32>
    %174 = arith.mulf %173, %172 : vector<1x8xf32>
    %175 = arith.addf %148, %174 : vector<1x8xf32>
    %176 = arith.mulf %68, %95 : vector<4x8xf32>
    %177 = vector.shape_cast %176 : vector<4x8xf32> to vector<1x4x8xf32>
    %cst_68 = arith.constant dense<0.000000e+00> : vector<1xf32>
    %178 = vector.multi_reduction <add>, %177, %cst_68 [1, 2] : vector<1x4x8xf32> to vector<1xf32>
    %179 = vector.shape_cast %178 : vector<1xf32> to vector<1x1x1xf32>
    %180 = vector.extract %179[0, 0, 0] : f32 from vector<1x1x1xf32>
    %cst_69 = arith.constant 3.125000e-02 : f32
    %181 = arith.mulf %180, %cst_69 : f32
    %182 = arith.mulf %176, %176 : vector<4x8xf32>
    %183 = vector.shape_cast %182 : vector<4x8xf32> to vector<1x4x8xf32>
    %cst_70 = arith.constant dense<0.000000e+00> : vector<1xf32>
    %184 = vector.multi_reduction <add>, %183, %cst_70 [1, 2] : vector<1x4x8xf32> to vector<1xf32>
    %185 = vector.shape_cast %184 : vector<1xf32> to vector<1x1x1xf32>
    %186 = vector.extract %185[0, 0, 0] : f32 from vector<1x1x1xf32>
    %cst_71 = arith.constant 3.125000e-02 : f32
    %187 = arith.mulf %186, %cst_71 : f32
    %188 = arith.mulf %181, %181 : f32
    %189 = arith.subf %187, %188 : f32
    %cst_72 = arith.constant 9.99999974E-6 : f32
    %190 = arith.addf %189, %cst_72 : f32
    %191 = math.rsqrt %190 : f32
    %192 = vector.broadcast %191 : f32 to vector<4x8xf32>
    %193 = arith.mulf %176, %192 : vector<4x8xf32>
    %c7 = arith.constant 7 : index
    %c0_73 = arith.constant 0 : index
    %c0_74 = arith.constant 0 : index
    %194 = vector.load %arg3[%c7, %c0_73, %c0_74] : memref<8x8x8xf32, #tpu.memory_space<vmem>>, vector<1x8x8xf32>
    %195 = vector.shape_cast %194 : vector<1x8x8xf32> to vector<8x8xf32>
    %cst_75 = arith.constant dense<0.000000e+00> : vector<4x8xf32>
    %196 = tpu.matmul %193, %195, %cst_75 {dimension_numbers = #tpu.dot_dimension_numbers<[1], [0], [0], [1], [0, 0, 1, 1], [], []>} : vector<4x8xf32>, vector<8x8xf32>, vector<4x8xf32> -> vector<4x8xf32>
    %197 = arith.addf %170, %196 : vector<4x8xf32>
    %198 = arith.mulf %191, %181 : f32
    %c7_76 = arith.constant 7 : index
    %c0_77 = arith.constant 0 : index
    %199 = vector.load %arg4[%c7_76, %c0_77] : memref<8x8xf32, #tpu.memory_space<vmem>>, vector<1x8xf32>
    %200 = vector.broadcast %198 : f32 to vector<1x8xf32>
    %201 = arith.mulf %200, %199 : vector<1x8xf32>
    %202 = arith.addf %175, %201 : vector<1x8xf32>
    %c0_78 = arith.constant 0 : index
    %c0_79 = arith.constant 0 : index
    %203 = vector.load %arg5[%c0_78, %c0_79] : memref<1x8xf32, #tpu.memory_space<vmem>>, vector<1x8xf32>
    %204 = arith.subf %203, %202 : vector<1x8xf32>
    %205 = vector.broadcast %204 : vector<1x8xf32> to vector<4x8xf32>
    %206 = arith.addf %197, %205 : vector<4x8xf32>
    %cst_80 = arith.constant 1.000000e+00 : f32
    %207 = vector.broadcast %cst_80 : f32 to vector<4x8xf32>
    %208 = arith.addf %207, %206 : vector<4x8xf32>
    %209 = arith.mulf %0, %208 : vector<4x8xf32>
    %c0_81 = arith.constant 0 : index
    %c0_82 = arith.constant 0 : index
    %210 = vector.load %arg6[%c0_81, %c0_82] : memref<8x1xf32, #tpu.memory_space<vmem>>, vector<8x1xf32>
    %cst_83 = arith.constant dense<0.000000e+00> : vector<4x1xf32>
    %211 = tpu.matmul %209, %210, %cst_83 {dimension_numbers = #tpu.dot_dimension_numbers<[1], [0], [0], [1], [0, 0, 1, 1], [], []>} : vector<4x8xf32>, vector<8x1xf32>, vector<4x1xf32> -> vector<4x1xf32>
    %c0_84 = arith.constant 0 : index
    %c0_85 = arith.constant 0 : index
    %212 = memref.load %arg7[%c0_84, %c0_85] : memref<1x1xf32, #tpu.memory_space<smem>>
    %213 = vector.broadcast %212 : f32 to vector<4x1xf32>
    %214 = arith.addf %211, %213 : vector<4x1xf32>
    %c0_86 = arith.constant 0 : index
    %c0_87 = arith.constant 0 : index
    %215 = vector.load %arg8[%c0_86, %c0_87] : memref<4x1xf32, #tpu.memory_space<vmem>>, vector<4x1xf32>
    tpu.vector_store %arg8[%c0_86, %c0_87], %214 {strides = array<i32>} : memref<4x1xf32, #tpu.memory_space<vmem>>, vector<4x1xf32>,
    return
  }
}

</mosaic_0001>

<llo_original>
// kernel: model1_forward.1
$region0: #{model1_forward.1}
  #allocation0 [shape = 'u32[]', space=smem, size = 0x4, offset = 0x4, fixed_abs, tag = 'smem constant byte address 0x4 - core index']
  #allocation1 [shape = 'u32[72,128]{1,0:T(1,128)}', space=vmem, size = 0x9000, scoped, tag = 'internal scratch']
  #allocation2 [shape = 'f32[1,1]{1,0:T(1,128)S(6)}', space=smem, size = 0x200, scoped, tag = 'scoped memory for model1_forward.1']
  %s0 = inlined_call_operand.vmem [shape: f32[4,8], index: 0, kind: input, shape index: {}]
  %s1 = inlined_call_operand.vmem [shape: f32[8,8], index: 1, kind: input, shape index: {}]
  %s2 = inlined_call_operand.vmem [shape: f32[1,8], index: 2, kind: input, shape index: {}]
  %s3 = inlined_call_operand.vmem [shape: f32[8,8,8], index: 3, kind: input, shape index: {}]
  %s4 = inlined_call_operand.vmem [shape: f32[8,8], index: 4, kind: input, shape index: {}]
  %s5 = inlined_call_operand.vmem [shape: f32[1,8], index: 5, kind: input, shape index: {}]
  %s6 = inlined_call_operand.vmem [shape: f32[8,1], index: 6, kind: input, shape index: {}]
  %s7 = inlined_call_operand.<no memory space> [shape: f32[1,1], index: 7, kind: input, shape index: {}]
  %s8 = inlined_call_operand.vmem [shape: f32[4,1], index: 8, kind: output, shape index: {}]
  %s9 = sld [smem:[#allocation0]]
  $region42: #{model1_forward.1} parent=0
    _
  %s11 = ssub.s32 1, %s9
  %s12 = scalar_select 0, %s11, %s9
  %13 = sst [smem:[#allocation2]] %s7
  // Predicated region
  $region2: #{model1_forward.1} parent=0 // pred_check
    _
  $region3: #{model1_forward.1} parent=0 // pred_check_branch
    %15 = sbr.rel (0) target = $region5
  $region4: #{model1_forward.1} parent=0 // pred_region
    _
  $region5: #{model1_forward.1} parent=0 // pred_fallthru
    _
  // Predicated region
  $region6: #{model1_forward.1} parent=0 // pred_check
    _
  $region7: #{model1_forward.1} parent=0 // pred_check_branch
    %17 = sbr.rel (0) target = $region9
  $region8: #{model1_forward.1} parent=0 // pred_region
    _
  $region9: #{model1_forward.1} parent=0 // pred_fallthru
    _
  // Predicated region
  $region10: #{model1_forward.1} parent=0 // pred_check
    _
  $region11: #{model1_forward.1} parent=0 // pred_check_branch
    %19 = sbr.rel (0) target = $region13
  $region12: #{model1_forward.1} parent=0 // pred_region
    _
  $region13: #{model1_forward.1} parent=0 // pred_fallthru
    _
  // Predicated region
  $region14: #{model1_forward.1} parent=0 // pred_check
    _
  $region15: #{model1_forward.1} parent=0 // pred_check_branch
    %21 = sbr.rel (0) target = $region17
  $region16: #{model1_forward.1} parent=0 // pred_region
    _
  $region17: #{model1_forward.1} parent=0 // pred_fallthru
    _
  // Predicated region
  $region18: #{model1_forward.1} parent=0 // pred_check
    _
  $region19: #{model1_forward.1} parent=0 // pred_check_branch
    %23 = sbr.rel (0) target = $region21
  $region20: #{model1_forward.1} parent=0 // pred_region
    _
  $region21: #{model1_forward.1} parent=0 // pred_fallthru
    _
  // Predicated region
  $region22: #{model1_forward.1} parent=0 // pred_check
    _
  $region23: #{model1_forward.1} parent=0 // pred_check_branch
    %25 = sbr.rel (0) target = $region25
  $region24: #{model1_forward.1} parent=0 // pred_region
    _
  $region25: #{model1_forward.1} parent=0 // pred_fallthru
    _
  // Predicated region
  $region26: #{model1_forward.1} parent=0 // pred_check
    _
  $region27: #{model1_forward.1} parent=0 // pred_check_branch
    %27 = sbr.rel (0) target = $region29
  $region28: #{model1_forward.1} parent=0 // pred_region
    _
  $region29: #{model1_forward.1} parent=0 // pred_fallthru
    _
  // Predicated region
  $region30: #{model1_forward.1} parent=0 // pred_check
    _
  $region31: #{model1_forward.1} parent=0 // pred_check_branch
    %29 = sbr.rel (0) target = $region33
  $region32: #{model1_forward.1} parent=0 // pred_region
    _
  $region33: #{model1_forward.1} parent=0 // pred_fallthru
    _
  %v30 = vld [vmem:[%s0] sm:$0xf]
  %v31 = vand.u32 2147483647, %v30
  %v32 = vxor.u32 %v31, 2147483648
  %v33 = vmul.f32 %v32, 1.442695
  %v34 = vpow.pop %v33
  %v35 = vadd.f32 %v34, 1.0
  %v36 = vrcp.pop %v35
  %v37 = vmul.f32 %v35, %v36
  %v38 = vsub.f32 1.0, %v37
  %v39 = vmul.f32 %v36, %v38
  %v40 = vadd.f32 %v36, %v39
  %vm41 = vweird.f32 %v35
  %vm42 = vweird.f32 %v36
  %vm43 = vmor %vm41, %vm42
  %v44 = vsel %vm43, %v36, %v40
  %v45 = vand.u32 2147483647, %v35
  %vm46 = vcmp.eq.f32.partialorder %v45, 8.507059e+37
  %v47 = vand.u32 %v35, 2147483648
  %v48 = vor.u32 1.1754944e-38, %v47
  %v49 = vsel %vm46, %v48, %v44
  %v50 = vmul.f32 1.0, %v49
  %v51 = vld [vmem:[%s1] sm:$0xff]
  %v52 = vld [vmem:[%s2] sm:$0x1]
  %v54 = vperm.slane %v52, 0
  %vm56 = vcmask 64512
  %v58 = vsel %vm56, %v50, 0
  %60 = vmatpush.msra.mxu0 0.0
  %61 = vmatpush.msra.mxu0 0.0
  %62 = vmatpush.msra.mxu0 0.0
  %63 = vmatpush.msra.mxu0 0.0
  %64 = vmatpush.msra.mxu0 0.0
  %65 = vmatpush.msra.mxu0 0.0
  %66 = vmatpush.msra.mxu0 0.0
  %67 = vmatpush.msra.mxu0 0.0
  %68 = vmatpush.msra.mxu0 0.0
  %69 = vmatpush.msra.mxu0 0.0
  %70 = vmatpush.msra.mxu0 0.0
  %71 = vmatpush.msra.mxu0 0.0
  %72 = vmatpush.msra.mxu0 0.0
  %73 = vmatpush.msra.mxu0 0.0
  %74 = vmatpush.msra.mxu0 0.0
  %75 = vmatpush.msra.mxu0 %v51
  %76 = vmatmul.f32.gmra.mxu0 %v58
  %v77 = vpop.f32.mrf.mxu0
  %v78 = vadd.f32 %v54, %v77
  %79 = vdwg.mxu0
  %v80 = vmul.f32 %v78, %v78
  %vm81 = vcmask 60416
  %v82 = vsel %vm81, %v80, 0.0
  %83 = vadd.xlane.f32.xlu0 %v82
  %v84 = vpop.xlane.xlu0 %83
  %v85 = vrot.slane %v84, 4
  %v86 = vadd.f32 %v84, %v85
  %v87 = vrot.slane %v86, 2
  %v88 = vadd.f32 %v86, %v87
  %v89 = vrot.slane %v88, 1
  %v90 = vadd.f32 %v88, %v89
  %s91 = vtos %v90
  %s92 = smul.f32 %s91, 0.03125
  %v93 = vmul.f32 %v80, %v80
  %v94 = vsel %vm81, %v93, 0.0
  %95 = vadd.xlane.f32.xlu0 %v94
  %v96 = vpop.xlane.xlu0 %95
  %v97 = vrot.slane %v96, 4
  %v98 = vadd.f32 %v96, %v97
  %v99 = vrot.slane %v98, 2
  %v100 = vadd.f32 %v98, %v99
  %v101 = vrot.slane %v100, 1
  %v102 = vadd.f32 %v100, %v101
  %s103 = vtos %v102
  %s104 = smul.f32 %s103, 0.03125
  %s105 = smul.f32 %s92, %s92
  %s106 = ssub.f32 %s104, %s105
  %s107 = sadd.f32 %s106, 1e-05
  %v108 = vstv %s107
  %v109 = vrsqrt.pop %v108
  %v110 = vmul.f32 %v109, %v108
  %v111 = vmul.f32 %v110, %v109
  %v112 = vmul.f32 0.5, %v111
  %v113 = vsub.f32 1.5, %v112
  %v114 = vmul.f32 %v109, %v113
  %vm115 = vweird.f32 %v108
  %vm116 = vweird.f32 %v109
  %vm117 = vmor %vm115, %vm116
  %v118 = vsel %vm117, %v109, %v114
  %s119 = vtos %v118
  %v120 = vstv %s119
  %v121 = vmul.f32 %v80, %v120
  %s122 = scalar_lea.vmem %s3, 8
  %v123 = vld [vmem:[%s122] sm:$0xff]
  %s124 = smul.f32 %s119, %s92
  %v125 = vld [vmem:[%s4 + $0x1] sm:$0x1]
  %v126 = vstv %s124
  %v127 = vmul.f32 %v126, %v125
  %v128 = vadd.f32 %v127, 0.0
  %v129 = vmul.f32 %v93, %v93
  %v130 = vsel %vm81, %v129, 0.0
  %131 = vadd.xlane.f32.xlu0 %v130
  %v132 = vpop.xlane.xlu0 %131
  %v133 = vrot.slane %v132, 4
  %v134 = vadd.f32 %v132, %v133
  %v135 = vrot.slane %v134, 2
  %v136 = vadd.f32 %v134, %v135
  %v137 = vrot.slane %v136, 1
  %v138 = vadd.f32 %v136, %v137
  %s139 = vtos %v138
  %s140 = smul.f32 %s139, 0.03125
  %s141 = smul.f32 %s104, %s104
  %s142 = ssub.f32 %s140, %s141
  %s143 = sadd.f32 %s142, 1e-05
  %v144 = vstv %s143
  %v145 = vrsqrt.pop %v144
  %v146 = vmul.f32 %v145, %v144
  %v147 = vmul.f32 %v146, %v145
  %v148 = vmul.f32 0.5, %v147
  %v149 = vsub.f32 1.5, %v148
  %v150 = vmul.f32 %v145, %v149
  %vm151 = vweird.f32 %v144
  %vm152 = vweird.f32 %v145
  %vm153 = vmor %vm151, %vm152
  %v154 = vsel %vm153, %v145, %v150
  %s155 = vtos %v154
  %v156 = vstv %s155
  %v157 = vmul.f32 %v93, %v156
  %s158 = scalar_lea.vmem %s3, 16
  %v159 = vld [vmem:[%s158] sm:$0xff]
  %v161 = vsel %vm56, %v157, 0
  %163 = vmatpush.msra.mxu0 0.0
  %164 = vmatpush.msra.mxu0 0.0
  %165 = vmatpush.msra.mxu0 0.0
  %166 = vmatpush.msra.mxu0 0.0
  %167 = vmatpush.msra.mxu0 0.0
  %168 = vmatpush.msra.mxu0 0.0
  %169 = vmatpush.msra.mxu0 0.0
  %170 = vmatpush.msra.mxu0 0.0
  %171 = vmatpush.msra.mxu0 0.0
  %172 = vmatpush.msra.mxu0 0.0
  %173 = vmatpush.msra.mxu0 0.0
  %174 = vmatpush.msra.mxu0 0.0
  %175 = vmatpush.msra.mxu0 0.0
  %176 = vmatpush.msra.mxu0 0.0
  %177 = vmatpush.msra.mxu0 0.0
  %178 = vmatpush.msra.mxu0 %v159
  %179 = vmatmul.f32.gmra.mxu0 %v161
  %v180 = vpop.f32.mrf.mxu0
  %v181 = vadd.f32 0.0, %v180
  %182 = vdwg.mxu0
  %v184 = vsel %vm56, %v121, 0
  %186 = vmatpush.msra.mxu0 0.0
  %187 = vmatpush.msra.mxu0 0.0
  %188 = vmatpush.msra.mxu0 0.0
  %189 = vmatpush.msra.mxu0 0.0
  %190 = vmatpush.msra.mxu0 0.0
  %191 = vmatpush.msra.mxu0 0.0
  %192 = vmatpush.msra.mxu0 0.0
  %193 = vmatpush.msra.mxu0 0.0
  %194 = vmatpush.msra.mxu0 0.0
  %195 = vmatpush.msra.mxu0 0.0
  %196 = vmatpush.msra.mxu0 0.0
  %197 = vmatpush.msra.mxu0 0.0
  %198 = vmatpush.msra.mxu0 0.0
  %199 = vmatpush.msra.mxu0 0.0
  %200 = vmatpush.msra.mxu0 0.0
  %201 = vmatpush.msra.mxu0 %v123
  %202 = vmatmul.f32.gmra.mxu0 %v184
  %v203 = vpop.f32.mrf.mxu0
  %v204 = vadd.f32 %v181, %v203
  %205 = vdwg.mxu0
  %s206 = smul.f32 %s155, %s104
  %v207 = vld [vmem:[%s4 + $0x2] sm:$0x1]
  %v208 = vstv %s206
  %v209 = vmul.f32 %v208, %v207
  %v210 = vadd.f32 %v128, %v209
  %v211 = vmul.f32 %v80, %v93
  %v212 = vsel %vm81, %v211, 0.0
  %213 = vadd.xlane.f32.xlu0 %v212
  %v214 = vpop.xlane.xlu0 %213
  %v215 = vrot.slane %v214, 4
  %v216 = vadd.f32 %v214, %v215
  %v217 = vrot.slane %v216, 2
  %v218 = vadd.f32 %v216, %v217
  %v219 = vrot.slane %v218, 1
  %v220 = vadd.f32 %v218, %v219
  %s221 = vtos %v220
  %s222 = smul.f32 %s221, 0.03125
  %v223 = vmul.f32 %v211, %v211
  %v224 = vsel %vm81, %v223, 0.0
  %225 = vadd.xlane.f32.xlu0 %v224
  %v226 = vpop.xlane.xlu0 %225
  %v227 = vrot.slane %v226, 4
  %v228 = vadd.f32 %v226, %v227
  %v229 = vrot.slane %v228, 2
  %v230 = vadd.f32 %v228, %v229
  %v231 = vrot.slane %v230, 1
  %v232 = vadd.f32 %v230, %v231
  %s233 = vtos %v232
  %s234 = smul.f32 %s233, 0.03125
  %s235 = smul.f32 %s222, %s222
  %s236 = ssub.f32 %s234, %s235
  %s237 = sadd.f32 %s236, 1e-05
  %v238 = vstv %s237
  %v239 = vrsqrt.pop %v238
  %v240 = vmul.f32 %v239, %v238
  %v241 = vmul.f32 %v240, %v239
  %v242 = vmul.f32 0.5, %v241
  %v243 = vsub.f32 1.5, %v242
  %v244 = vmul.f32 %v239, %v243
  %vm245 = vweird.f32 %v238
  %vm246 = vweird.f32 %v239
  %vm247 = vmor %vm245, %vm246
  %v248 = vsel %vm247, %v239, %v244
  %s249 = vtos %v248
  %v250 = vstv %s249
  %v251 = vmul.f32 %v211, %v250
  %s252 = scalar_lea.vmem %s3, 24
  %v253 = vld [vmem:[%s252] sm:$0xff]
  %v255 = vsel %vm56, %v251, 0
  %257 = vmatpush.msra.mxu0 0.0
  %258 = vmatpush.msra.mxu0 0.0
  %259 = vmatpush.msra.mxu0 0.0
  %260 = vmatpush.msra.mxu0 0.0
  %261 = vmatpush.msra.mxu0 0.0
  %262 = vmatpush.msra.mxu0 0.0
  %263 = vmatpush.msra.mxu0 0.0
  %264 = vmatpush.msra.mxu0 0.0
  %265 = vmatpush.msra.mxu0 0.0
  %266 = vmatpush.msra.mxu0 0.0
  %267 = vmatpush.msra.mxu0 0.0
  %268 = vmatpush.msra.mxu0 0.0
  %269 = vmatpush.msra.mxu0 0.0
  %270 = vmatpush.msra.mxu0 0.0
  %271 = vmatpush.msra.mxu0 0.0
  %272 = vmatpush.msra.mxu0 %v253
  %273 = vmatmul.f32.gmra.mxu0 %v255
  %v274 = vpop.f32.mrf.mxu0
  %v275 = vadd.f32 0.0, %v274
  %276 = vdwg.mxu0
  %v277 = vadd.f32 %v204, %v275
  %s278 = smul.f32 %s249, %s222
  %v279 = vld [vmem:[%s4 + $0x3] sm:$0x1]
  %v280 = vstv %s278
  %v281 = vmul.f32 %v280, %v279
  %v282 = vadd.f32 %v210, %v281
  %v283 = vmul.f32 %v129, %v129
  %v284 = vsel %vm81, %v283, 0.0
  %285 = vadd.xlane.f32.xlu0 %v284
  %v286 = vpop.xlane.xlu0 %285
  %v287 = vrot.slane %v286, 4
  %v288 = vadd.f32 %v286, %v287
  %v289 = vrot.slane %v288, 2
  %v290 = vadd.f32 %v288, %v289
  %v291 = vrot.slane %v290, 1
  %v292 = vadd.f32 %v290, %v291
  %s293 = vtos %v292
  %s294 = smul.f32 %s293, 0.03125
  %s295 = smul.f32 %s140, %s140
  %s296 = ssub.f32 %s294, %s295
  %s297 = sadd.f32 %s296, 1e-05
  %v298 = vstv %s297
  %v299 = vrsqrt.pop %v298
  %v300 = vmul.f32 %v299, %v298
  %v301 = vmul.f32 %v300, %v299
  %v302 = vmul.f32 0.5, %v301
  %v303 = vsub.f32 1.5, %v302
  %v304 = vmul.f32 %v299, %v303
  %vm305 = vweird.f32 %v298
  %vm306 = vweird.f32 %v299
  %vm307 = vmor %vm305, %vm306
  %v308 = vsel %vm307, %v299, %v304
  %s309 = vtos %v308
  %v310 = vstv %s309
  %v311 = vmul.f32 %v129, %v310
  %s312 = scalar_lea.vmem %s3, 32
  %v313 = vld [vmem:[%s312] sm:$0xff]
  %v315 = vsel %vm56, %v311, 0
  %317 = vmatpush.msra.mxu0 0.0
  %318 = vmatpush.msra.mxu0 0.0
  %319 = vmatpush.msra.mxu0 0.0
  %320 = vmatpush.msra.mxu0 0.0
  %321 = vmatpush.msra.mxu0 0.0
  %322 = vmatpush.msra.mxu0 0.0
  %323 = vmatpush.msra.mxu0 0.0
  %324 = vmatpush.msra.mxu0 0.0
  %325 = vmatpush.msra.mxu0 0.0
  %326 = vmatpush.msra.mxu0 0.0
  %327 = vmatpush.msra.mxu0 0.0
  %328 = vmatpush.msra.mxu0 0.0
  %329 = vmatpush.msra.mxu0 0.0
  %330 = vmatpush.msra.mxu0 0.0
  %331 = vmatpush.msra.mxu0 0.0
  %332 = vmatpush.msra.mxu0 %v313
  %333 = vmatmul.f32.gmra.mxu0 %v315
  %v334 = vpop.f32.mrf.mxu0
  %v335 = vadd.f32 0.0, %v334
  %336 = vdwg.mxu0
  %v337 = vadd.f32 %v277, %v335
  %s338 = smul.f32 %s309, %s140
  %v339 = vld [vmem:[%s4 + $0x4] sm:$0x1]
  %v340 = vstv %s338
  %v341 = vmul.f32 %v340, %v339
  %v342 = vadd.f32 %v282, %v341
  %v343 = vmul.f32 %v93, %v211
  %v344 = vsel %vm81, %v343, 0.0
  %345 = vadd.xlane.f32.xlu0 %v344
  %v346 = vpop.xlane.xlu0 %345
  %v347 = vrot.slane %v346, 4
  %v348 = vadd.f32 %v346, %v347
  %v349 = vrot.slane %v348, 2
  %v350 = vadd.f32 %v348, %v349
  %v351 = vrot.slane %v350, 1
  %v352 = vadd.f32 %v350, %v351
  %s353 = vtos %v352
  %s354 = smul.f32 %s353, 0.03125
  %v355 = vmul.f32 %v343, %v343
  %v356 = vsel %vm81, %v355, 0.0
  %357 = vadd.xlane.f32.xlu0 %v356
  %v358 = vpop.xlane.xlu0 %357
  %v359 = vrot.slane %v358, 4
  %v360 = vadd.f32 %v358, %v359
  %v361 = vrot.slane %v360, 2
  %v362 = vadd.f32 %v360, %v361
  %v363 = vrot.slane %v362, 1
  %v364 = vadd.f32 %v362, %v363
  %s365 = vtos %v364
  %s366 = smul.f32 %s365, 0.03125
  %s367 = smul.f32 %s354, %s354
  %s368 = ssub.f32 %s366, %s367
  %s369 = sadd.f32 %s368, 1e-05
  %v370 = vstv %s369
  %v371 = vrsqrt.pop %v370
  %v372 = vmul.f32 %v371, %v370
  %v373 = vmul.f32 %v372, %v371
  %v374 = vmul.f32 0.5, %v373
  %v375 = vsub.f32 1.5, %v374
  %v376 = vmul.f32 %v371, %v375
  %vm377 = vweird.f32 %v370
  %vm378 = vweird.f32 %v371
  %vm379 = vmor %vm377, %vm378
  %v380 = vsel %vm379, %v371, %v376
  %s381 = vtos %v380
  %v382 = vstv %s381
  %v383 = vmul.f32 %v343, %v382
  %s384 = scalar_lea.vmem %s3, 40
  %v385 = vld [vmem:[%s384] sm:$0xff]
  %v387 = vsel %vm56, %v383, 0
  %389 = vmatpush.msra.mxu0 0.0
  %390 = vmatpush.msra.mxu0 0.0
  %391 = vmatpush.msra.mxu0 0.0
  %392 = vmatpush.msra.mxu0 0.0
  %393 = vmatpush.msra.mxu0 0.0
  %394 = vmatpush.msra.mxu0 0.0
  %395 = vmatpush.msra.mxu0 0.0
  %396 = vmatpush.msra.mxu0 0.0
  %397 = vmatpush.msra.mxu0 0.0
  %398 = vmatpush.msra.mxu0 0.0
  %399 = vmatpush.msra.mxu0 0.0
  %400 = vmatpush.msra.mxu0 0.0
  %401 = vmatpush.msra.mxu0 0.0
  %402 = vmatpush.msra.mxu0 0.0
  %403 = vmatpush.msra.mxu0 0.0
  %404 = vmatpush.msra.mxu0 %v385
  %405 = vmatmul.f32.gmra.mxu0 %v387
  %v406 = vpop.f32.mrf.mxu0
  %v407 = vadd.f32 0.0, %v406
  %408 = vdwg.mxu0
  %v409 = vadd.f32 %v337, %v407
  %s410 = smul.f32 %s381, %s354
  %v411 = vld [vmem:[%s4 + $0x5] sm:$0x1]
  %v412 = vstv %s410
  %v413 = vmul.f32 %v412, %v411
  %v414 = vadd.f32 %v342, %v413
  %v415 = vmul.f32 %v223, %v223
  %v416 = vsel %vm81, %v415, 0.0
  %417 = vadd.xlane.f32.xlu0 %v416
  %v418 = vpop.xlane.xlu0 %417
  %v419 = vrot.slane %v418, 4
  %v420 = vadd.f32 %v418, %v419
  %v421 = vrot.slane %v420, 2
  %v422 = vadd.f32 %v420, %v421
  %v423 = vrot.slane %v422, 1
  %v424 = vadd.f32 %v422, %v423
  %s425 = vtos %v424
  %s426 = smul.f32 %s425, 0.03125
  %s427 = smul.f32 %s234, %s234
  %s428 = ssub.f32 %s426, %s427
  %s429 = sadd.f32 %s428, 1e-05
  %v430 = vstv %s429
  %v431 = vrsqrt.pop %v430
  %v432 = vmul.f32 %v431, %v430
  %v433 = vmul.f32 %v432, %v431
  %v434 = vmul.f32 0.5, %v433
  %v435 = vsub.f32 1.5, %v434
  %v436 = vmul.f32 %v431, %v435
  %vm437 = vweird.f32 %v430
  %vm438 = vweird.f32 %v431
  %vm439 = vmor %vm437, %vm438
  %v440 = vsel %vm439, %v431, %v436
  %s441 = vtos %v440
  %v442 = vstv %s441
  %v443 = vmul.f32 %v223, %v442
  %s444 = scalar_lea.vmem %s3, 48
  %v445 = vld [vmem:[%s444] sm:$0xff]
  %v447 = vsel %vm56, %v443, 0
  %449 = vmatpush.msra.mxu0 0.0
  %450 = vmatpush.msra.mxu0 0.0
  %451 = vmatpush.msra.mxu0 0.0
  %452 = vmatpush.msra.mxu0 0.0
  %453 = vmatpush.msra.mxu0 0.0
  %454 = vmatpush.msra.mxu0 0.0
  %455 = vmatpush.msra.mxu0 0.0
  %456 = vmatpush.msra.mxu0 0.0
  %457 = vmatpush.msra.mxu0 0.0
  %458 = vmatpush.msra.mxu0 0.0
  %459 = vmatpush.msra.mxu0 0.0
  %460 = vmatpush.msra.mxu0 0.0
  %461 = vmatpush.msra.mxu0 0.0
  %462 = vmatpush.msra.mxu0 0.0
  %463 = vmatpush.msra.mxu0 0.0
  %464 = vmatpush.msra.mxu0 %v445
  %465 = vmatmul.f32.gmra.mxu0 %v447
  %v466 = vpop.f32.mrf.mxu0
  %v467 = vadd.f32 0.0, %v466
  %468 = vdwg.mxu0
  %v469 = vadd.f32 %v409, %v467
  %s470 = smul.f32 %s441, %s234
  %v471 = vld [vmem:[%s4 + $0x6] sm:$0x1]
  %v472 = vstv %s470
  %v473 = vmul.f32 %v472, %v471
  %v474 = vadd.f32 %v414, %v473
  %v475 = vmul.f32 %v211, %v129
  %v476 = vsel %vm81, %v475, 0.0
  %477 = vadd.xlane.f32.xlu0 %v476
  %v478 = vpop.xlane.xlu0 %477
  %v479 = vrot.slane %v478, 4
  %v480 = vadd.f32 %v478, %v479
  %v481 = vrot.slane %v480, 2
  %v482 = vadd.f32 %v480, %v481
  %v483 = vrot.slane %v482, 1
  %v484 = vadd.f32 %v482, %v483
  %s485 = vtos %v484
  %s486 = smul.f32 %s485, 0.03125
  %v487 = vmul.f32 %v475, %v475
  %v488 = vsel %vm81, %v487, 0.0
  %489 = vadd.xlane.f32.xlu0 %v488
  %v490 = vpop.xlane.xlu0 %489
  %v491 = vrot.slane %v490, 4
  %v492 = vadd.f32 %v490, %v491
  %v493 = vrot.slane %v492, 2
  %v494 = vadd.f32 %v492, %v493
  %v495 = vrot.slane %v494, 1
  %v496 = vadd.f32 %v494, %v495
  %s497 = vtos %v496
  %s498 = smul.f32 %s497, 0.03125
  %s499 = smul.f32 %s486, %s486
  %s500 = ssub.f32 %s498, %s499
  %s501 = sadd.f32 %s500, 1e-05
  %v502 = vstv %s501
  %v503 = vrsqrt.pop %v502
  %v504 = vmul.f32 %v503, %v502
  %v505 = vmul.f32 %v504, %v503
  %v506 = vmul.f32 0.5, %v505
  %v507 = vsub.f32 1.5, %v506
  %v508 = vmul.f32 %v503, %v507
  %vm509 = vweird.f32 %v502
  %vm510 = vweird.f32 %v503
  %vm511 = vmor %vm509, %vm510
  %v512 = vsel %vm511, %v503, %v508
  %s513 = vtos %v512
  %v514 = vstv %s513
  %v515 = vmul.f32 %v475, %v514
  %s516 = scalar_lea.vmem %s3, 56
  %v517 = vld [vmem:[%s516] sm:$0xff]
  %v519 = vsel %vm56, %v515, 0
  %521 = vmatpush.msra.mxu0 0.0
  %522 = vmatpush.msra.mxu0 0.0
  %523 = vmatpush.msra.mxu0 0.0
  %524 = vmatpush.msra.mxu0 0.0
  %525 = vmatpush.msra.mxu0 0.0
  %526 = vmatpush.msra.mxu0 0.0
  %527 = vmatpush.msra.mxu0 0.0
  %528 = vmatpush.msra.mxu0 0.0
  %529 = vmatpush.msra.mxu0 0.0
  %530 = vmatpush.msra.mxu0 0.0
  %531 = vmatpush.msra.mxu0 0.0
  %532 = vmatpush.msra.mxu0 0.0
  %533 = vmatpush.msra.mxu0 0.0
  %534 = vmatpush.msra.mxu0 0.0
  %535 = vmatpush.msra.mxu0 0.0
  %536 = vmatpush.msra.mxu0 %v517
  %537 = vmatmul.f32.gmra.mxu0 %v519
  %v538 = vpop.f32.mrf.mxu0
  %v539 = vadd.f32 0.0, %v538
  %540 = vdwg.mxu0
  %v541 = vadd.f32 %v469, %v539
  %s542 = smul.f32 %s513, %s486
  %v543 = vld [vmem:[%s4 + $0x7] sm:$0x1]
  %v544 = vstv %s542
  %v545 = vmul.f32 %v544, %v543
  %v546 = vadd.f32 %v474, %v545
  %v547 = vld [vmem:[%s5] sm:$0x1]
  %v548 = vsub.f32 %v547, %v546
  %v550 = vperm.slane %v548, 0
  %v552 = vadd.f32 %v541, %v550
  %v553 = vadd.f32 %v552, 1.0
  %v554 = vmul.f32 %v30, %v553
  %v555 = vld [vmem:[%s6] sm:$0xff]
  %s556 = sld [smem:[#allocation2]]
  %v557 = vstv %s556
  %v559 = vsel %vm56, %v554, 0
  %561 = vmatpush.msra.mxu0 0.0
  %562 = vmatpush.msra.mxu0 0.0
  %563 = vmatpush.msra.mxu0 0.0
  %564 = vmatpush.msra.mxu0 0.0
  %565 = vmatpush.msra.mxu0 0.0
  %566 = vmatpush.msra.mxu0 0.0
  %567 = vmatpush.msra.mxu0 0.0
  %568 = vmatpush.msra.mxu0 0.0
  %569 = vmatpush.msra.mxu0 0.0
  %570 = vmatpush.msra.mxu0 0.0
  %571 = vmatpush.msra.mxu0 0.0
  %572 = vmatpush.msra.mxu0 0.0
  %573 = vmatpush.msra.mxu0 0.0
  %574 = vmatpush.msra.mxu0 0.0
  %575 = vmatpush.msra.mxu0 0.0
  %576 = vmatpush.msra.mxu0 %v555
  %577 = vmatmul.f32.gmra.mxu0 %v559
  %v578 = vpop.f32.mrf.mxu0
  %v579 = vadd.f32 %v557, %v578
  %580 = vdwg.mxu0
  %vm581 = vcmask 3072
  %582 = vst.msk [vmem:[%s8] sm:$0xf] %vm581, %v579
  // Predicated region
  $region34: #{model1_forward.1} parent=0 // pred_check
    _
  $region35: #{model1_forward.1} parent=0 // pred_check_branch
    %584 = sbr.rel (0) target = $region37
  $region36: #{model1_forward.1} parent=0 // pred_region
    _
  $region37: #{model1_forward.1} parent=0 // pred_fallthru
    _
  // Predicated region
  $region38: #{model1_forward.1} parent=0 // pred_check
    _
  $region39: #{model1_forward.1} parent=0 // pred_check_branch
    %586 = sbr.rel (0) target = $region41
  $region40: #{model1_forward.1} parent=0 // pred_region
    _
  $region41: #{model1_forward.1} parent=0 // pred_fallthru
    _

</llo_original>
